<compile_context>
chip_gen: v7x
topology: tpu7x:2x2x1
jax: 0.10.0
libtpu: 0.0.40
codegen_flags: <defaults>
</compile_context>

<pallas_src>
import functools

import jax
import jax.numpy as jnp
from jax import lax
from jax.experimental import pallas as pl
from jax.experimental.pallas import tpu as pltpu


# ----------------------------------------------------------------------------
# Kernels
# ----------------------------------------------------------------------------
def _agg_kernel_resident(idx_ref, ydT_ref, out_ref):
    """ydT fully VMEM-resident: one m-tile per grid step, no reduction axis.

    idx_ref : (k, 1, tm) int32   neighbour ids for this m-tile (all k)
    ydT_ref : (f, n)             full transposed database (features x rows)
    out_ref : (k, f, tm)         out[j, c, i] = yd[idx[j, 0, i], c]
    """
    k = idx_ref.shape[0]
    n = ydT_ref.shape[1]
    tm = idx_ref.shape[2]

    row_ids = lax.broadcasted_iota(jnp.int32, (n, tm), 0)
    ydT = ydT_ref[...]
    for j in range(k):                      # k is small & static: unrolled
        onehot = (row_ids == idx_ref[j]).astype(ydT.dtype)
        out_ref[j, :, :] = jnp.dot(
            ydT, onehot, preferred_element_type=jnp.float32
        ).astype(out_ref.dtype)


def _agg_kernel_tiled(idx_ref, ydT_ref, out_ref, acc_ref):
    """Tiled reduction over database rows (grid axis 1 is the n axis).

    idx_ref : (k, 1, tm) int32
    ydT_ref : (f, tn)
    out_ref : (k, f, tm)
    acc_ref : (k, f, tm) f32     VMEM accumulator (persists over grid axis 1)
    """
    r = pl.program_id(1)
    k = idx_ref.shape[0]
    tn = ydT_ref.shape[1]

    @pl.when(r == 0)
    def _init():
        acc_ref[...] = jnp.zeros_like(acc_ref)

    # Offset the (1, tm) index row instead of the (tn, tm) iota: fewer VALU ops.
    row_ids = lax.broadcasted_iota(jnp.int32, (tn, idx_ref.shape[2]), 0)
    off = r * tn
    ydT = ydT_ref[...]
    for j in range(k):
        onehot = (row_ids == (idx_ref[j] - off)).astype(ydT.dtype)
        acc_ref[j, :, :] += jnp.dot(ydT, onehot,
                                    preferred_element_type=jnp.float32)

    @pl.when(r == pl.num_programs(1) - 1)
    def _finalize():
        out_ref[...] = acc_ref[...].astype(out_ref.dtype)


# ----------------------------------------------------------------------------
# Chip-aware tiling plan
# ----------------------------------------------------------------------------
def _vmem_capacity_bytes():
    """Per-TensorCore VMEM: 128 MiB on v5e/v6e, 64 MiB on v7x.
    Query when possible; fall back to the smallest (v7x) so we never over-commit."""
    try:
        cap = int(pltpu.get_tpu_info().vmem_capacity_bytes)
        if cap > 0:
            return cap
    except Exception:
        pass
    return 64 * 1024 * 1024


def _round_up(x, a):
    return ((x + a - 1) // a) * a


def _pick_tile(dim, target, aligns=(256, 128)):
    """Largest tile <= target that is MXU-aligned (256 preferred, 128 fallback)
    and divides dim.  Falls back to the full dim (always a legal block shape)."""
    if dim <= target:
        return dim
    for align in aligns:
        t = (min(target, dim) // align) * align
        while t >= align:
            if dim % t == 0:
                return t
            t -= align
    return dim


def _footprint_bytes(k, f, tm, tn, dsize, osize, resident):
    """Conservative per-step VMEM footprint estimate (Pallas double-buffers I/O)."""
    tm_p = max(_round_up(tm, 128), 128)
    tn_p = max(_round_up(tn, 128), 128)
    f_p = max(_round_up(f, 8), 8)
    ydT = 2 * f_p * tn_p * dsize                 # database tile (double-buffered)
    idx = 2 * k * 8 * tm_p * 4                   # (k, 1, tm) int32, sublane-padded
    out = 2 * k * f_p * tm_p * osize             # output block (double-buffered)
    onehot = tn_p * tm_p * (max(dsize, 4) + 4)   # one-hot + iota/compare temps
    mmres = f_p * tm_p * 4                       # f32 matmul result
    acc = 0 if resident else k * f_p * tm_p * 4  # f32 accumulator scratch
    return ydT + idx + out + onehot + mmres + acc


def _plan(k, m, f, n, dsize, osize, budget):
    """Pick (tm, tn, resident, footprint).  Prefers fully VMEM-resident ydT
    (single reduction step); otherwise tiles the reduction over n."""
    # 1) resident ydT
    for tm_target in (1024, 512, 256, 128):
        tm = _pick_tile(m, tm_target)
        fp = _footprint_bytes(k, f, tm, n, dsize, osize, resident=True)
        if fp <= budget:
            # keep >= 2 parallel m-tiles when m allows (v7x has 2 TensorCores)
            if m // tm < 2 and m >= 256 and m % 128 == 0:
                tm2 = _pick_tile(m, max(128, (m // 2) // 128 * 128))
                if tm2 < m and m % tm2 == 0:
                    tm = tm2
            return tm, n, True, _footprint_bytes(k, f, tm, n, dsize, osize, True)
    # 2) tiled reduction over n
    for tn_target in (4096, 2048, 1024, 512, 256):
        tn = _pick_tile(n, tn_target)
        if tn >= n:
            continue
        for tm_target in (512, 256, 128):
            tm = _pick_tile(m, tm_target)
            fp = _footprint_bytes(k, f, tm, tn, dsize, osize, resident=False)
            if fp <= budget:
                return tm, tn, False, fp
    # 3) last resort: smallest aligned tiles (extreme shapes only)
    tm = _pick_tile(m, 128)
    tn = _pick_tile(n, 256)
    return tm, tn, False, _footprint_bytes(k, f, tm, tn, dsize, osize, False)


# ----------------------------------------------------------------------------
# pallas_call wrapper
# ----------------------------------------------------------------------------
def graph_aggregate(idx3, ydT):
    """idx3: (k, 1, m) int32, ydT: (f, n).
    Returns z3 (k, f, m) with z3[j, c, i] = yd[idx3[j, 0, i], c]."""
    k, _, m = idx3.shape
    f, n = ydT.shape
    dsize = jnp.dtype(ydT.dtype).itemsize
    osize = dsize

    cap = _vmem_capacity_bytes()
    budget = int(cap * 0.70)               # leave headroom for Mosaic scratch
    tm, tn, resident, fp = _plan(k, m, f, n, dsize, osize, budget)
    vmem_limit = min(int(cap * 0.90), max(fp + (8 << 20), 32 << 20))

    cost = pl.CostEstimate(
        flops=2 * f * n * m * k,
        transcendentals=0,
        bytes_accessed=(f * n * dsize * (1 if resident else max(m // tm, 1))
                        + m * k * 4 + k * f * m * osize),
    )

    if resident:
        grid = (m // tm,)
        in_specs = [
            pl.BlockSpec((k, 1, tm), lambda t: (0, 0, t)),   # neighbour indices
            pl.BlockSpec((f, n), lambda t: (0, 0)),          # full resident ydT
        ]
        out_specs = pl.BlockSpec((k, f, tm), lambda t: (0, 0, t))
        scratch_shapes = ()
        kernel = _agg_kernel_resident
        dims = ("parallel",)
    else:
        grid = (m // tm, n // tn)                            # reduction axis last
        in_specs = [
            pl.BlockSpec((k, 1, tm), lambda t, r: (0, 0, t)),
            pl.BlockSpec((f, tn), lambda t, r: (0, r)),
        ]
        out_specs = pl.BlockSpec((k, f, tm), lambda t, r: (0, 0, t))
        scratch_shapes = [pltpu.VMEM((k, f, tm), jnp.float32)]
        kernel = _agg_kernel_tiled
        dims = ("parallel", "arbitrary")

    return pl.pallas_call(
        kernel,
        out_shape=jax.ShapeDtypeStruct((k, f, m), ydT.dtype),
        grid_spec=pltpu.PrefetchScalarGridSpec(
            num_scalar_prefetch=0,
            grid=grid,
            in_specs=in_specs,
            out_specs=out_specs,
            scratch_shapes=scratch_shapes,
        ),
        compiler_params=pltpu.CompilerParams(
            dimension_semantics=dims,
            vmem_limit_bytes=int(vmem_limit),
        ),
        cost_estimate=cost,
    )(idx3, ydT)


# ----------------------------------------------------------------------------
# Module wrapper (matches the PyTorch forward)
# ----------------------------------------------------------------------------
@functools.partial(jax.jit, static_argnames=("scale", "k"))
def _forward(y_patch, yd_patch, idx_k, *, scale, k):
    m = y_patch.shape[0]
    yd = yd_patch.reshape(m, -1)                         # (n, f), n == m
    n, f = yd.shape
    assert f % scale == 0, "feature dim must be divisible by scale"

    # Clamp untrusted indices (PyTorch gather would raise on OOB; the one-hot
    # gather would otherwise silently select nothing for an OOB index).
    idx = jnp.clip(idx_k.reshape(m, k).astype(jnp.int32), 0, n - 1)
    idx3 = jnp.transpose(idx, (1, 0)).reshape(k, 1, m)   # (k, 1, m)
    ydT = jnp.transpose(yd, (1, 0))                      # (f, n): one tiny pass
    z3 = graph_aggregate(idx3, ydT)                      # (k, f, m)
    # Pure row-major reshape == the PyTorch permute+view chain; no transpose.
    return z3.reshape(1, k * (f // scale), m * scale)


class GraphAggregationSpatialGai:
    """JAX/Pallas port of GraphAggregation_spatial_gai (no parameters)."""

    def __init__(self, scale, k, patchsize, stride, padding=None):
        self.scale = scale
        self.k = k
        self.patchsize = patchsize
        self.stride = stride
        self.padding = padding

    def __call__(self, y_patch, yd_patch, idx_k):
        return _forward(y_patch, yd_patch, idx_k, scale=self.scale, k=self.k)


def reference(y_patch, yd_patch, idx_k, scale, k):
    """Pure-JAX transliteration of the PyTorch forward (for verification)."""
    y_patch = y_patch[None]                      # (1, m, fy)
    m = y_patch.shape[1]
    yd = yd_patch.reshape(1, m, -1)              # (1, n, f)
    b, n, f = yd.shape
    z = jnp.take(yd[0], idx_k[0], axis=0)        # (m, k, f): z[i,j,c]=yd[idx[i,j],c]
    z = jnp.transpose(z, (0, 2, 1))[None]        # (1, m, f, k)  == torch z_patch
    z = jnp.transpose(z, (0, 3, 2, 1))           # (1, k, f, m)  == permute(0,3,2,1)
    z = z.reshape(b, k, f // scale, scale, m)
    return z.reshape(b, k * (f // scale), m * scale)


if __name__ == "__main__":
    key = jax.random.PRNGKey(0)
    scale, k, patchsize, stride = 2, 4, 3, 1
    m = 16                       # number of query patches (n == m)
    f = 32                       # database feature dim (divisible by scale)
    fy = patchsize * patchsize   # query patch feature dim

    k1, k2, k3 = jax.random.split(key, 3)
    y_patch = jax.random.normal(k1, (m, fy), dtype=jnp.float32)
    yd_patch = jax.random.normal(k2, (m, f), dtype=jnp.float32)
    idx_k = jax.random.randint(k3, (1, m, k), 0, m, dtype=jnp.int32)

    mod = GraphAggregationSpatialGai(scale, k, patchsize, stride)
    out = jax.block_until_ready(mod(y_patch, yd_patch, idx_k))

    ref = reference(y_patch, yd_patch, idx_k, scale, k)
    assert out.shape == (1, k * (f // scale), m * scale), out.shape
    assert out.dtype == yd_patch.dtype
    assert jnp.allclose(out, ref, atol=1e-5, rtol=1e-5), "mismatch vs reference"
    print("KERNEL_OK")
</pallas_src>

<mosaic_0001>
module attributes {stable_mosaic.version = 11 : i64} {
  func.func @_agg_kernel_resident(%arg0: i32, %arg1: memref<4x1x16xi32, #tpu.memory_space<vmem>>, %arg2: memref<32x16xf32, #tpu.memory_space<vmem>>, %arg3: memref<4x32x16xf32, #tpu.memory_space<vmem>>) attributes {dimension_semantics = [#tpu.dimension_semantics<parallel>], iteration_bounds = array<i64: 1>, scalar_prefetch = 0 : i64, scratch_operands = 0 : i64, tpu.core_type = #tpu.core_type<tc>, window_params = [{transform_indices = @transform_0, window_bounds = array<i64: 4, 1, 16>}, {pipeline_mode = #tpu.pipeline_mode<synchronous>, transform_indices = @transform_1, window_bounds = array<i64: 32, 16>}, {transform_indices = @transform_2, window_bounds = array<i64: 4, 32, 16>}]} {
    %0 = tpu.iota {dimensions = array<i32: 0>} : vector<16x16xi32>
    %c0 = arith.constant 0 : index
    %c0_0 = arith.constant 0 : index
    %1 = vector.load %arg2[%c0, %c0_0] : memref<32x16xf32, #tpu.memory_space<vmem>>, vector<32x16xf32>
    %c0_1 = arith.constant 0 : index
    %c0_2 = arith.constant 0 : index
    %c0_3 = arith.constant 0 : index
    %2 = vector.load %arg1[%c0_1, %c0_2, %c0_3] : memref<4x1x16xi32, #tpu.memory_space<vmem>>, vector<1x1x16xi32>
    %3 = vector.shape_cast %2 : vector<1x1x16xi32> to vector<1x16xi32>
    %4 = vector.broadcast %3 : vector<1x16xi32> to vector<16x16xi32>
    %5 = arith.cmpi eq, %0, %4 : vector<16x16xi32>
    %6 = arith.extui %5 : vector<16x16xi1> to vector<16x16xi32>
    %7 = arith.sitofp %6 : vector<16x16xi32> to vector<16x16xf32>
    %cst = arith.constant dense<0.000000e+00> : vector<32x16xf32>
    %8 = tpu.matmul %1, %7, %cst {dimension_numbers = #tpu.dot_dimension_numbers<[1], [0], [0], [1], [0, 0, 1, 1], [], []>} : vector<32x16xf32>, vector<16x16xf32>, vector<32x16xf32> -> vector<32x16xf32>
    %c0_4 = arith.constant 0 : index
    %c0_5 = arith.constant 0 : index
    %c0_6 = arith.constant 0 : index
    %9 = vector.load %arg3[%c0_4, %c0_5, %c0_6] : memref<4x32x16xf32, #tpu.memory_space<vmem>>, vector<1x32x16xf32>
    %10 = vector.shape_cast %9 : vector<1x32x16xf32> to vector<32x16xf32>
    %11 = vector.shape_cast %8 : vector<32x16xf32> to vector<1x32x16xf32>
    tpu.vector_store %arg3[%c0_4, %c0_5, %c0_6], %11 {strides = array<i32>} : memref<4x32x16xf32, #tpu.memory_space<vmem>>, vector<1x32x16xf32>,
    %c1 = arith.constant 1 : index
    %c0_7 = arith.constant 0 : index
    %c0_8 = arith.constant 0 : index
    %12 = vector.load %arg1[%c1, %c0_7, %c0_8] : memref<4x1x16xi32, #tpu.memory_space<vmem>>, vector<1x1x16xi32>
    %13 = vector.shape_cast %12 : vector<1x1x16xi32> to vector<1x16xi32>
    %14 = vector.broadcast %13 : vector<1x16xi32> to vector<16x16xi32>
    %15 = arith.cmpi eq, %0, %14 : vector<16x16xi32>
    %16 = arith.extui %15 : vector<16x16xi1> to vector<16x16xi32>
    %17 = arith.sitofp %16 : vector<16x16xi32> to vector<16x16xf32>
    %cst_9 = arith.constant dense<0.000000e+00> : vector<32x16xf32>
    %18 = tpu.matmul %1, %17, %cst_9 {dimension_numbers = #tpu.dot_dimension_numbers<[1], [0], [0], [1], [0, 0, 1, 1], [], []>} : vector<32x16xf32>, vector<16x16xf32>, vector<32x16xf32> -> vector<32x16xf32>
    %c1_10 = arith.constant 1 : index
    %c0_11 = arith.constant 0 : index
    %c0_12 = arith.constant 0 : index
    %19 = vector.load %arg3[%c1_10, %c0_11, %c0_12] : memref<4x32x16xf32, #tpu.memory_space<vmem>>, vector<1x32x16xf32>
    %20 = vector.shape_cast %19 : vector<1x32x16xf32> to vector<32x16xf32>
    %21 = vector.shape_cast %18 : vector<32x16xf32> to vector<1x32x16xf32>
    tpu.vector_store %arg3[%c1_10, %c0_11, %c0_12], %21 {strides = array<i32>} : memref<4x32x16xf32, #tpu.memory_space<vmem>>, vector<1x32x16xf32>,
    %c2 = arith.constant 2 : index
    %c0_13 = arith.constant 0 : index
    %c0_14 = arith.constant 0 : index
    %22 = vector.load %arg1[%c2, %c0_13, %c0_14] : memref<4x1x16xi32, #tpu.memory_space<vmem>>, vector<1x1x16xi32>
    %23 = vector.shape_cast %22 : vector<1x1x16xi32> to vector<1x16xi32>
    %24 = vector.broadcast %23 : vector<1x16xi32> to vector<16x16xi32>
    %25 = arith.cmpi eq, %0, %24 : vector<16x16xi32>
    %26 = arith.extui %25 : vector<16x16xi1> to vector<16x16xi32>
    %27 = arith.sitofp %26 : vector<16x16xi32> to vector<16x16xf32>
    %cst_15 = arith.constant dense<0.000000e+00> : vector<32x16xf32>
    %28 = tpu.matmul %1, %27, %cst_15 {dimension_numbers = #tpu.dot_dimension_numbers<[1], [0], [0], [1], [0, 0, 1, 1], [], []>} : vector<32x16xf32>, vector<16x16xf32>, vector<32x16xf32> -> vector<32x16xf32>
    %c2_16 = arith.constant 2 : index
    %c0_17 = arith.constant 0 : index
    %c0_18 = arith.constant 0 : index
    %29 = vector.load %arg3[%c2_16, %c0_17, %c0_18] : memref<4x32x16xf32, #tpu.memory_space<vmem>>, vector<1x32x16xf32>
    %30 = vector.shape_cast %29 : vector<1x32x16xf32> to vector<32x16xf32>
    %31 = vector.shape_cast %28 : vector<32x16xf32> to vector<1x32x16xf32>
    tpu.vector_store %arg3[%c2_16, %c0_17, %c0_18], %31 {strides = array<i32>} : memref<4x32x16xf32, #tpu.memory_space<vmem>>, vector<1x32x16xf32>,
    %c3 = arith.constant 3 : index
    %c0_19 = arith.constant 0 : index
    %c0_20 = arith.constant 0 : index
    %32 = vector.load %arg1[%c3, %c0_19, %c0_20] : memref<4x1x16xi32, #tpu.memory_space<vmem>>, vector<1x1x16xi32>
    %33 = vector.shape_cast %32 : vector<1x1x16xi32> to vector<1x16xi32>
    %34 = vector.broadcast %33 : vector<1x16xi32> to vector<16x16xi32>
    %35 = arith.cmpi eq, %0, %34 : vector<16x16xi32>
    %36 = arith.extui %35 : vector<16x16xi1> to vector<16x16xi32>
    %37 = arith.sitofp %36 : vector<16x16xi32> to vector<16x16xf32>
    %cst_21 = arith.constant dense<0.000000e+00> : vector<32x16xf32>
    %38 = tpu.matmul %1, %37, %cst_21 {dimension_numbers = #tpu.dot_dimension_numbers<[1], [0], [0], [1], [0, 0, 1, 1], [], []>} : vector<32x16xf32>, vector<16x16xf32>, vector<32x16xf32> -> vector<32x16xf32>
    %c3_22 = arith.constant 3 : index
    %c0_23 = arith.constant 0 : index
    %c0_24 = arith.constant 0 : index
    %39 = vector.load %arg3[%c3_22, %c0_23, %c0_24] : memref<4x32x16xf32, #tpu.memory_space<vmem>>, vector<1x32x16xf32>
    %40 = vector.shape_cast %39 : vector<1x32x16xf32> to vector<32x16xf32>
    %41 = vector.shape_cast %38 : vector<32x16xf32> to vector<1x32x16xf32>
    tpu.vector_store %arg3[%c3_22, %c0_23, %c0_24], %41 {strides = array<i32>} : memref<4x32x16xf32, #tpu.memory_space<vmem>>, vector<1x32x16xf32>,
    return
  }
  func.func @transform_0(%arg0: i32) -> (i32, i32, i32) {
    %c0_i32 = arith.constant 0 : i32
    %c0_i32_0 = arith.constant 0 : i32
    %c0_i32_1 = arith.constant 0 : i32
    return %c0_i32, %c0_i32_0, %arg0 : i32, i32, i32
  }
  func.func @transform_1(%arg0: i32) -> (i32, i32) {
    %c0_i32 = arith.constant 0 : i32
    %c0_i32_0 = arith.constant 0 : i32
    %c0_i32_1 = arith.constant 0 : i32
    return %c0_i32, %c0_i32_0 : i32, i32
  }
  func.func @transform_2(%arg0: i32) -> (i32, i32, i32) {
    %c0_i32 = arith.constant 0 : i32
    %c0_i32_0 = arith.constant 0 : i32
    %c0_i32_1 = arith.constant 0 : i32
    return %c0_i32, %c0_i32_0, %arg0 : i32, i32, i32
  }
}

</mosaic_0001>

<llo_original>
// kernel: _forward.1
$region0: #{_forward.1}
  #allocation0 [shape = 'u32[]', space=smem, size = 0x4, offset = 0x4, fixed_abs, tag = 'smem constant byte address 0x4 - core index']
  #allocation1 [shape = 'u32[144,128]{1,0:T(1,128)}', space=vmem, size = 0x12000, scoped, tag = 'internal scratch']
  %s0 = inlined_call_operand.vmem [shape: s32[4,1,16], index: 0, kind: input, shape index: {}]
  %s1 = inlined_call_operand.vmem [shape: f32[32,16], index: 1, kind: input, shape index: {}]
  %s2 = inlined_call_operand.vmem [shape: f32[4,32,16], index: 2, kind: output, shape index: {}]
  %s3 = sld [smem:[#allocation0]]
  $region18: #{_forward.1} parent=0
    _
  %s5 = ssub.s32 1, %s3
  %s6 = scalar_select 0, %s5, %s3
  // Predicated region
  $region2: #{_forward.1} parent=0 // pred_check
    _
  $region3: #{_forward.1} parent=0 // pred_check_branch
    %8 = sbr.rel (0) target = $region5
  $region4: #{_forward.1} parent=0 // pred_region
    _
  $region5: #{_forward.1} parent=0 // pred_fallthru
    _
  // Predicated region
  $region6: #{_forward.1} parent=0 // pred_check
    _
  $region7: #{_forward.1} parent=0 // pred_check_branch
    %10 = sbr.rel (0) target = $region9
  $region8: #{_forward.1} parent=0 // pred_region
    _
  $region9: #{_forward.1} parent=0 // pred_fallthru
    _
  %v11 = vlaneseq
  %v12 = vshrl.u32 %v11, 7
  %v13 = vadd.s32 %v12, 8
  %v14 = vld [vmem:[%s1] sm:$0xff]
  %v15 = vld [vmem:[%s1 + $0x8] sm:$0xff]
  %v16 = vld [vmem:[%s1 + $0x10] sm:$0xff]
  %v17 = vld [vmem:[%s1 + $0x18] sm:$0xff]
  %v18 = vld [vmem:[%s0] sm:$0x1]
  %v19 = vlaneseq
  %v20 = vshrl.u32 %v19, 7
  %v21 = vsub.s32 0, %v20
  %v22 = vrot.slane %v18, %v21
  %vm23 = vcmp.eq.s32.totalorder %v12, %v22
  %vm24 = vcmp.eq.s32.totalorder %v13, %v22
  %v25 = vsel %vm23, 1, 0
  %v26 = vsel %vm24, 1, 0
  %v27 = vcvt.s32.f32 %v25
  %v28 = vcvt.s32.f32 %v26
  %vm29 = vcmask 130048
  %v31 = vsel %vm29, %v14, 0
  %v34 = vsel %vm29, %v15, 0
  %v37 = vsel %vm29, %v16, 0
  %v40 = vsel %vm29, %v17, 0
  %42 = vmatprep.subr.mxu0 0.0
  %43 = vmatpush1.msra.mxu0 %v27
  %44 = vmatprep.subr.mxu0 0.0
  %45 = vmatpush1.msra.mxu0 %v28
  %46 = vmatprep.subr.mxu0 0.0
  %47 = vmatpush1.msra.mxu0 0.0
  %48 = vmatprep.subr.mxu0 0.0
  %49 = vmatpush1.msra.mxu0 0.0
  %50 = vmatprep.subr.mxu0 0.0
  %51 = vmatpush1.msra.mxu0 0.0
  %52 = vmatprep.subr.mxu0 0.0
  %53 = vmatpush1.msra.mxu0 0.0
  %54 = vmatprep.subr.mxu0 0.0
  %55 = vmatpush1.msra.mxu0 0.0
  %56 = vmatprep.subr.mxu0 0.0
  %57 = vmatpush1.msra.mxu0 0.0
  %58 = vmatprep.subr.mxu0 0.0
  %59 = vmatpush1.msra.mxu0 0.0
  %60 = vmatprep.subr.mxu0 0.0
  %61 = vmatpush1.msra.mxu0 0.0
  %62 = vmatprep.subr.mxu0 0.0
  %63 = vmatpush1.msra.mxu0 0.0
  %64 = vmatprep.subr.mxu0 0.0
  %65 = vmatpush1.msra.mxu0 0.0
  %66 = vmatprep.subr.mxu0 0.0
  %67 = vmatpush1.msra.mxu0 0.0
  %68 = vmatprep.subr.mxu0 0.0
  %69 = vmatpush1.msra.mxu0 0.0
  %70 = vmatprep.subr.mxu0 0.0
  %71 = vmatpush1.msra.mxu0 0.0
  %72 = vmatprep.subr.mxu0 0.0
  %73 = vmatpush1.msra.mxu0 0.0
  %74 = vmatprep.subr.mxu0 0.0
  %75 = vmatpush1.msra.mxu0 0.0
  %76 = vmatprep.subr.mxu0 0.0
  %77 = vmatpush1.msra.mxu0 0.0
  %78 = vmatprep.subr.mxu0 0.0
  %79 = vmatpush1.msra.mxu0 0.0
  %80 = vmatprep.subr.mxu0 0.0
  %81 = vmatpush1.msra.mxu0 0.0
  %82 = vmatprep.subr.mxu0 0.0
  %83 = vmatpush1.msra.mxu0 0.0
  %84 = vmatprep.subr.mxu0 0.0
  %85 = vmatpush1.msra.mxu0 0.0
  %86 = vmatprep.subr.mxu0 0.0
  %87 = vmatpush1.msra.mxu0 0.0
  %88 = vmatprep.subr.mxu0 0.0
  %89 = vmatpush1.msra.mxu0 0.0
  %90 = vmatprep.subr.mxu0 0.0
  %91 = vmatpush1.msra.mxu0 0.0
  %92 = vmatprep.subr.mxu0 0.0
  %93 = vmatpush1.msra.mxu0 0.0
  %94 = vmatprep.subr.mxu0 0.0
  %95 = vmatpush1.msra.mxu0 0.0
  %96 = vmatprep.subr.mxu0 0.0
  %97 = vmatpush1.msra.mxu0 0.0
  %98 = vmatprep.subr.mxu0 0.0
  %99 = vmatpush1.msra.mxu0 0.0
  %100 = vmatprep.subr.mxu0 0.0
  %101 = vmatpush1.msra.mxu0 0.0
  %102 = vmatprep.subr.mxu0 0.0
  %103 = vmatpush1.msra.mxu0 0.0
  %104 = vmatprep.subr.mxu0 0.0
  %105 = vmatpush1.msra.mxu0 0.0
  %106 = vmatprep.mubr.f32.mxu0 0.0
  %107 = vmatmul.mubr.f32.gmra.mrb[0].mxu0 %v31
  %v108 = vpop.f32.mrb[0].mxu0
  %v109 = vadd.f32 0.0, %v108
  %v110 = vpop.f32.mrb[0].mxu0
  %111 = vmatprep.mubr.f32.mxu0 0.0
  %112 = vmatmul.mubr.f32.gmra.mrb[0].mxu0 %v34
  %v113 = vpop.f32.mrb[0].mxu0
  %v114 = vadd.f32 0.0, %v113
  %v115 = vpop.f32.mrb[0].mxu0
  %116 = vmatprep.mubr.f32.mxu0 0.0
  %117 = vmatmul.mubr.f32.gmra.mrb[0].mxu0 %v37
  %v118 = vpop.f32.mrb[0].mxu0
  %v119 = vadd.f32 0.0, %v118
  %v120 = vpop.f32.mrb[0].mxu0
  %121 = vmatprep.mubr.f32.mxu0 0.0
  %122 = vmatmul.mubr.f32.gmra.mrb[0].mxu0 %v40
  %v123 = vpop.f32.mrb[0].mxu0
  %v124 = vadd.f32 0.0, %v123
  %v125 = vpop.f32.mrb[0].mxu0
  %126 = vdwg.mxu0
  %127 = vst.msk [vmem:[%s2] sm:$0xff] %vm29, %v109
  %128 = vst.msk [vmem:[%s2 + $0x8] sm:$0xff] %vm29, %v114
  %129 = vst.msk [vmem:[%s2 + $0x10] sm:$0xff] %vm29, %v119
  %130 = vst.msk [vmem:[%s2 + $0x18] sm:$0xff] %vm29, %v124
  %s131 = scalar_lea.vmem %s0, 1
  %v132 = vld [vmem:[%s131] sm:$0x1]
  %v133 = vlaneseq
  %v134 = vshrl.u32 %v133, 7
  %v135 = vsub.s32 0, %v134
  %v136 = vrot.slane %v132, %v135
  %vm137 = vcmp.eq.s32.totalorder %v12, %v136
  %vm138 = vcmp.eq.s32.totalorder %v13, %v136
  %v139 = vsel %vm137, 1, 0
  %v140 = vsel %vm138, 1, 0
  %v141 = vcvt.s32.f32 %v139
  %v142 = vcvt.s32.f32 %v140
  %143 = vmatprep.subr.mxu0 0.0
  %144 = vmatpush1.msra.mxu0 %v141
  %145 = vmatprep.subr.mxu0 0.0
  %146 = vmatpush1.msra.mxu0 %v142
  %147 = vmatprep.subr.mxu0 0.0
  %148 = vmatpush1.msra.mxu0 0.0
  %149 = vmatprep.subr.mxu0 0.0
  %150 = vmatpush1.msra.mxu0 0.0
  %151 = vmatprep.subr.mxu0 0.0
  %152 = vmatpush1.msra.mxu0 0.0
  %153 = vmatprep.subr.mxu0 0.0
  %154 = vmatpush1.msra.mxu0 0.0
  %155 = vmatprep.subr.mxu0 0.0
  %156 = vmatpush1.msra.mxu0 0.0
  %157 = vmatprep.subr.mxu0 0.0
  %158 = vmatpush1.msra.mxu0 0.0
  %159 = vmatprep.subr.mxu0 0.0
  %160 = vmatpush1.msra.mxu0 0.0
  %161 = vmatprep.subr.mxu0 0.0
  %162 = vmatpush1.msra.mxu0 0.0
  %163 = vmatprep.subr.mxu0 0.0
  %164 = vmatpush1.msra.mxu0 0.0
  %165 = vmatprep.subr.mxu0 0.0
  %166 = vmatpush1.msra.mxu0 0.0
  %167 = vmatprep.subr.mxu0 0.0
  %168 = vmatpush1.msra.mxu0 0.0
  %169 = vmatprep.subr.mxu0 0.0
  %170 = vmatpush1.msra.mxu0 0.0
  %171 = vmatprep.subr.mxu0 0.0
  %172 = vmatpush1.msra.mxu0 0.0
  %173 = vmatprep.subr.mxu0 0.0
  %174 = vmatpush1.msra.mxu0 0.0
  %175 = vmatprep.subr.mxu0 0.0
  %176 = vmatpush1.msra.mxu0 0.0
  %177 = vmatprep.subr.mxu0 0.0
  %178 = vmatpush1.msra.mxu0 0.0
  %179 = vmatprep.subr.mxu0 0.0
  %180 = vmatpush1.msra.mxu0 0.0
  %181 = vmatprep.subr.mxu0 0.0
  %182 = vmatpush1.msra.mxu0 0.0
  %183 = vmatprep.subr.mxu0 0.0
  %184 = vmatpush1.msra.mxu0 0.0
  %185 = vmatprep.subr.mxu0 0.0
  %186 = vmatpush1.msra.mxu0 0.0
  %187 = vmatprep.subr.mxu0 0.0
  %188 = vmatpush1.msra.mxu0 0.0
  %189 = vmatprep.subr.mxu0 0.0
  %190 = vmatpush1.msra.mxu0 0.0
  %191 = vmatprep.subr.mxu0 0.0
  %192 = vmatpush1.msra.mxu0 0.0
  %193 = vmatprep.subr.mxu0 0.0
  %194 = vmatpush1.msra.mxu0 0.0
  %195 = vmatprep.subr.mxu0 0.0
  %196 = vmatpush1.msra.mxu0 0.0
  %197 = vmatprep.subr.mxu0 0.0
  %198 = vmatpush1.msra.mxu0 0.0
  %199 = vmatprep.subr.mxu0 0.0
  %200 = vmatpush1.msra.mxu0 0.0
  %201 = vmatprep.subr.mxu0 0.0
  %202 = vmatpush1.msra.mxu0 0.0
  %203 = vmatprep.subr.mxu0 0.0
  %204 = vmatpush1.msra.mxu0 0.0
  %205 = vmatprep.subr.mxu0 0.0
  %206 = vmatpush1.msra.mxu0 0.0
  %207 = vmatprep.mubr.f32.mxu0 0.0
  %208 = vmatmul.mubr.f32.gmra.mrb[0].mxu0 %v31
  %v209 = vpop.f32.mrb[0].mxu0
  %v210 = vadd.f32 0.0, %v209
  %v211 = vpop.f32.mrb[0].mxu0
  %212 = vmatprep.mubr.f32.mxu0 0.0
  %213 = vmatmul.mubr.f32.gmra.mrb[0].mxu0 %v34
  %v214 = vpop.f32.mrb[0].mxu0
  %v215 = vadd.f32 0.0, %v214
  %v216 = vpop.f32.mrb[0].mxu0
  %217 = vmatprep.mubr.f32.mxu0 0.0
  %218 = vmatmul.mubr.f32.gmra.mrb[0].mxu0 %v37
  %v219 = vpop.f32.mrb[0].mxu0
  %v220 = vadd.f32 0.0, %v219
  %v221 = vpop.f32.mrb[0].mxu0
  %222 = vmatprep.mubr.f32.mxu0 0.0
  %223 = vmatmul.mubr.f32.gmra.mrb[0].mxu0 %v40
  %v224 = vpop.f32.mrb[0].mxu0
  %v225 = vadd.f32 0.0, %v224
  %v226 = vpop.f32.mrb[0].mxu0
  %227 = vdwg.mxu0
  %s228 = scalar_lea.vmem %s2, 32
  %229 = vst.msk [vmem:[%s228] sm:$0xff] %vm29, %v210
  %230 = vst.msk [vmem:[%s228 + $0x8] sm:$0xff] %vm29, %v215
  %231 = vst.msk [vmem:[%s228 + $0x10] sm:$0xff] %vm29, %v220
  %232 = vst.msk [vmem:[%s228 + $0x18] sm:$0xff] %vm29, %v225
  %s233 = scalar_lea.vmem %s0, 2
  %v234 = vld [vmem:[%s233] sm:$0x1]
  %v235 = vlaneseq
  %v236 = vshrl.u32 %v235, 7
  %v237 = vsub.s32 0, %v236
  %v238 = vrot.slane %v234, %v237
  %vm239 = vcmp.eq.s32.totalorder %v12, %v238
  %vm240 = vcmp.eq.s32.totalorder %v13, %v238
  %v241 = vsel %vm239, 1, 0
  %v242 = vsel %vm240, 1, 0
  %v243 = vcvt.s32.f32 %v241
  %v244 = vcvt.s32.f32 %v242
  %245 = vmatprep.subr.mxu0 0.0
  %246 = vmatpush1.msra.mxu0 %v243
  %247 = vmatprep.subr.mxu0 0.0
  %248 = vmatpush1.msra.mxu0 %v244
  %249 = vmatprep.subr.mxu0 0.0
  %250 = vmatpush1.msra.mxu0 0.0
  %251 = vmatprep.subr.mxu0 0.0
  %252 = vmatpush1.msra.mxu0 0.0
  %253 = vmatprep.subr.mxu0 0.0
  %254 = vmatpush1.msra.mxu0 0.0
  %255 = vmatprep.subr.mxu0 0.0
  %256 = vmatpush1.msra.mxu0 0.0
  %257 = vmatprep.subr.mxu0 0.0
  %258 = vmatpush1.msra.mxu0 0.0
  %259 = vmatprep.subr.mxu0 0.0
  %260 = vmatpush1.msra.mxu0 0.0
  %261 = vmatprep.subr.mxu0 0.0
  %262 = vmatpush1.msra.mxu0 0.0
  %263 = vmatprep.subr.mxu0 0.0
  %264 = vmatpush1.msra.mxu0 0.0
  %265 = vmatprep.subr.mxu0 0.0
  %266 = vmatpush1.msra.mxu0 0.0
  %267 = vmatprep.subr.mxu0 0.0
  %268 = vmatpush1.msra.mxu0 0.0
  %269 = vmatprep.subr.mxu0 0.0
  %270 = vmatpush1.msra.mxu0 0.0
  %271 = vmatprep.subr.mxu0 0.0
  %272 = vmatpush1.msra.mxu0 0.0
  %273 = vmatprep.subr.mxu0 0.0
  %274 = vmatpush1.msra.mxu0 0.0
  %275 = vmatprep.subr.mxu0 0.0
  %276 = vmatpush1.msra.mxu0 0.0
  %277 = vmatprep.subr.mxu0 0.0
  %278 = vmatpush1.msra.mxu0 0.0
  %279 = vmatprep.subr.mxu0 0.0
  %280 = vmatpush1.msra.mxu0 0.0
  %281 = vmatprep.subr.mxu0 0.0
  %282 = vmatpush1.msra.mxu0 0.0
  %283 = vmatprep.subr.mxu0 0.0
  %284 = vmatpush1.msra.mxu0 0.0
  %285 = vmatprep.subr.mxu0 0.0
  %286 = vmatpush1.msra.mxu0 0.0
  %287 = vmatprep.subr.mxu0 0.0
  %288 = vmatpush1.msra.mxu0 0.0
  %289 = vmatprep.subr.mxu0 0.0
  %290 = vmatpush1.msra.mxu0 0.0
  %291 = vmatprep.subr.mxu0 0.0
  %292 = vmatpush1.msra.mxu0 0.0
  %293 = vmatprep.subr.mxu0 0.0
  %294 = vmatpush1.msra.mxu0 0.0
  %295 = vmatprep.subr.mxu0 0.0
  %296 = vmatpush1.msra.mxu0 0.0
  %297 = vmatprep.subr.mxu0 0.0
  %298 = vmatpush1.msra.mxu0 0.0
  %299 = vmatprep.subr.mxu0 0.0
  %300 = vmatpush1.msra.mxu0 0.0
  %301 = vmatprep.subr.mxu0 0.0
  %302 = vmatpush1.msra.mxu0 0.0
  %303 = vmatprep.subr.mxu0 0.0
  %304 = vmatpush1.msra.mxu0 0.0
  %305 = vmatprep.subr.mxu0 0.0
  %306 = vmatpush1.msra.mxu0 0.0
  %307 = vmatprep.subr.mxu0 0.0
  %308 = vmatpush1.msra.mxu0 0.0
  %309 = vmatprep.mubr.f32.mxu0 0.0
  %310 = vmatmul.mubr.f32.gmra.mrb[0].mxu0 %v31
  %v311 = vpop.f32.mrb[0].mxu0
  %v312 = vadd.f32 0.0, %v311
  %v313 = vpop.f32.mrb[0].mxu0
  %314 = vmatprep.mubr.f32.mxu0 0.0
  %315 = vmatmul.mubr.f32.gmra.mrb[0].mxu0 %v34
  %v316 = vpop.f32.mrb[0].mxu0
  %v317 = vadd.f32 0.0, %v316
  %v318 = vpop.f32.mrb[0].mxu0
  %319 = vmatprep.mubr.f32.mxu0 0.0
  %320 = vmatmul.mubr.f32.gmra.mrb[0].mxu0 %v37
  %v321 = vpop.f32.mrb[0].mxu0
  %v322 = vadd.f32 0.0, %v321
  %v323 = vpop.f32.mrb[0].mxu0
  %324 = vmatprep.mubr.f32.mxu0 0.0
  %325 = vmatmul.mubr.f32.gmra.mrb[0].mxu0 %v40
  %v326 = vpop.f32.mrb[0].mxu0
  %v327 = vadd.f32 0.0, %v326
  %v328 = vpop.f32.mrb[0].mxu0
  %329 = vdwg.mxu0
  %s330 = scalar_lea.vmem %s2, 64
  %331 = vst.msk [vmem:[%s330] sm:$0xff] %vm29, %v312
  %332 = vst.msk [vmem:[%s330 + $0x8] sm:$0xff] %vm29, %v317
  %333 = vst.msk [vmem:[%s330 + $0x10] sm:$0xff] %vm29, %v322
  %334 = vst.msk [vmem:[%s330 + $0x18] sm:$0xff] %vm29, %v327
  %s335 = scalar_lea.vmem %s0, 3
  %v336 = vld [vmem:[%s335] sm:$0x1]
  %v337 = vlaneseq
  %v338 = vshrl.u32 %v337, 7
  %v339 = vsub.s32 0, %v338
  %v340 = vrot.slane %v336, %v339
  %vm341 = vcmp.eq.s32.totalorder %v12, %v340
  %vm342 = vcmp.eq.s32.totalorder %v13, %v340
  %v343 = vsel %vm341, 1, 0
  %v344 = vsel %vm342, 1, 0
  %v345 = vcvt.s32.f32 %v343
  %v346 = vcvt.s32.f32 %v344
  %347 = vmatprep.subr.mxu0 0.0
  %348 = vmatpush1.msra.mxu0 %v345
  %349 = vmatprep.subr.mxu0 0.0
  %350 = vmatpush1.msra.mxu0 %v346
  %351 = vmatprep.subr.mxu0 0.0
  %352 = vmatpush1.msra.mxu0 0.0
  %353 = vmatprep.subr.mxu0 0.0
  %354 = vmatpush1.msra.mxu0 0.0
  %355 = vmatprep.subr.mxu0 0.0
  %356 = vmatpush1.msra.mxu0 0.0
  %357 = vmatprep.subr.mxu0 0.0
  %358 = vmatpush1.msra.mxu0 0.0
  %359 = vmatprep.subr.mxu0 0.0
  %360 = vmatpush1.msra.mxu0 0.0
  %361 = vmatprep.subr.mxu0 0.0
  %362 = vmatpush1.msra.mxu0 0.0
  %363 = vmatprep.subr.mxu0 0.0
  %364 = vmatpush1.msra.mxu0 0.0
  %365 = vmatprep.subr.mxu0 0.0
  %366 = vmatpush1.msra.mxu0 0.0
  %367 = vmatprep.subr.mxu0 0.0
  %368 = vmatpush1.msra.mxu0 0.0
  %369 = vmatprep.subr.mxu0 0.0
  %370 = vmatpush1.msra.mxu0 0.0
  %371 = vmatprep.subr.mxu0 0.0
  %372 = vmatpush1.msra.mxu0 0.0
  %373 = vmatprep.subr.mxu0 0.0
  %374 = vmatpush1.msra.mxu0 0.0
  %375 = vmatprep.subr.mxu0 0.0
  %376 = vmatpush1.msra.mxu0 0.0
  %377 = vmatprep.subr.mxu0 0.0
  %378 = vmatpush1.msra.mxu0 0.0
  %379 = vmatprep.subr.mxu0 0.0
  %380 = vmatpush1.msra.mxu0 0.0
  %381 = vmatprep.subr.mxu0 0.0
  %382 = vmatpush1.msra.mxu0 0.0
  %383 = vmatprep.subr.mxu0 0.0
  %384 = vmatpush1.msra.mxu0 0.0
  %385 = vmatprep.subr.mxu0 0.0
  %386 = vmatpush1.msra.mxu0 0.0
  %387 = vmatprep.subr.mxu0 0.0
  %388 = vmatpush1.msra.mxu0 0.0
  %389 = vmatprep.subr.mxu0 0.0
  %390 = vmatpush1.msra.mxu0 0.0
  %391 = vmatprep.subr.mxu0 0.0
  %392 = vmatpush1.msra.mxu0 0.0
  %393 = vmatprep.subr.mxu0 0.0
  %394 = vmatpush1.msra.mxu0 0.0
  %395 = vmatprep.subr.mxu0 0.0
  %396 = vmatpush1.msra.mxu0 0.0
  %397 = vmatprep.subr.mxu0 0.0
  %398 = vmatpush1.msra.mxu0 0.0
  %399 = vmatprep.subr.mxu0 0.0
  %400 = vmatpush1.msra.mxu0 0.0
  %401 = vmatprep.subr.mxu0 0.0
  %402 = vmatpush1.msra.mxu0 0.0
  %403 = vmatprep.subr.mxu0 0.0
  %404 = vmatpush1.msra.mxu0 0.0
  %405 = vmatprep.subr.mxu0 0.0
  %406 = vmatpush1.msra.mxu0 0.0
  %407 = vmatprep.subr.mxu0 0.0
  %408 = vmatpush1.msra.mxu0 0.0
  %409 = vmatprep.subr.mxu0 0.0
  %410 = vmatpush1.msra.mxu0 0.0
  %411 = vmatprep.mubr.f32.mxu0 0.0
  %412 = vmatmul.mubr.f32.gmra.mrb[0].mxu0 %v31
  %v413 = vpop.f32.mrb[0].mxu0
  %v414 = vadd.f32 0.0, %v413
  %v415 = vpop.f32.mrb[0].mxu0
  %416 = vmatprep.mubr.f32.mxu0 0.0
  %417 = vmatmul.mubr.f32.gmra.mrb[0].mxu0 %v34
  %v418 = vpop.f32.mrb[0].mxu0
  %v419 = vadd.f32 0.0, %v418
  %v420 = vpop.f32.mrb[0].mxu0
  %421 = vmatprep.mubr.f32.mxu0 0.0
  %422 = vmatmul.mubr.f32.gmra.mrb[0].mxu0 %v37
  %v423 = vpop.f32.mrb[0].mxu0
  %v424 = vadd.f32 0.0, %v423
  %v425 = vpop.f32.mrb[0].mxu0
  %426 = vmatprep.mubr.f32.mxu0 0.0
  %427 = vmatmul.mubr.f32.gmra.mrb[0].mxu0 %v40
  %v428 = vpop.f32.mrb[0].mxu0
  %v429 = vadd.f32 0.0, %v428
  %v430 = vpop.f32.mrb[0].mxu0
  %431 = vdwg.mxu0
  %s432 = scalar_lea.vmem %s2, 96
  %433 = vst.msk [vmem:[%s432] sm:$0xff] %vm29, %v414
  %434 = vst.msk [vmem:[%s432 + $0x8] sm:$0xff] %vm29, %v419
  %435 = vst.msk [vmem:[%s432 + $0x10] sm:$0xff] %vm29, %v424
  %436 = vst.msk [vmem:[%s432 + $0x18] sm:$0xff] %vm29, %v429
  // Predicated region
  $region10: #{_forward.1} parent=0 // pred_check
    _
  $region11: #{_forward.1} parent=0 // pred_check_branch
    %438 = sbr.rel (0) target = $region13
  $region12: #{_forward.1} parent=0 // pred_region
    _
  $region13: #{_forward.1} parent=0 // pred_fallthru
    _
  // Predicated region
  $region14: #{_forward.1} parent=0 // pred_check
    _
  $region15: #{_forward.1} parent=0 // pred_check_branch
    %440 = sbr.rel (0) target = $region17
  $region16: #{_forward.1} parent=0 // pred_region
    _
  $region17: #{_forward.1} parent=0 // pred_fallthru
    _

</llo_original>
